<compile_context>
chip_gen: v5e
topology: v5e:2x2
jax: 0.10.0
libtpu: 0.0.40
codegen_flags: <defaults>
</compile_context>

<pallas_src>
import jax
import jax.numpy as jnp
import numpy as np
from jax.experimental import pallas as pl
from jax.experimental.pallas import tpu as pltpu


def _gelu_tanh(x):
    # RE2 GeLU: 0.5 * x * (1 + tanh(sqrt(2/pi) * (x + 0.044715 * x^3)))
    # TODO(synk): if the reference Linear uses erf-form GELU, swap this for
    # jax.nn.gelu(x, approximate=False) (difference ~1e-3).
    c = 0.7978845608028654
    return 0.5 * x * (1.0 + jnp.tanh(c * (x + 0.044715 * x * x * x)))


def _round_up(x, m):
    return ((x + m - 1) // m) * m


def prediction_kernel(a_ref, b_ref, w1a_ref, w1b_ref, b1_ref, w2_ref, b2_ref, o_ref):
    # TODO(synk): nn.Dropout is identity at inference; training-mode dropout
    # (pltpu.prng_random_bits masking) is not implemented here.
    cdt = w1a_ref.dtype  # MXU operand dtype (f32 or bf16); accumulate stays f32.

    # Linear1 without concat: two MXU pushes accumulating into one f32 result.
    h = jnp.dot(a_ref[...].astype(cdt), w1a_ref[...],
                preferred_element_type=jnp.float32)
    h = h + jnp.dot(b_ref[...].astype(cdt), w1b_ref[...],
                    preferred_element_type=jnp.float32)
    h = h + b1_ref[...]
    h = _gelu_tanh(h)  # f32 elementwise (safe on v5e: no bf16 VPU/EUP there)

    # Linear2 (feed operands in the weight dtype; accumulate f32).
    out = jnp.dot(h.astype(w2_ref.dtype), w2_ref[...],
                  preferred_element_type=jnp.float32)
    out = out + b2_ref[...]
    o_ref[...] = out.astype(o_ref.dtype)


def prepare_prediction_params(w1, b1, w2, b2, *, compute_dtype=jnp.bfloat16):
    """One-time weight prep (call at parameter init, NOT per forward).

    w1: [2F, H], b1: [H] or [1, H], w2: [H, C], b2: [C] or [1, C].
    Splits W1 into the a-half / b-half, zero-pads hidden/class dims to
    lane-friendly multiples of 128, and casts weights to `compute_dtype`
    (biases stay f32 for the f32 epilogue).
    """
    Fin, H = w1.shape
    assert Fin % 2 == 0, f"w1 first dim must be even (concat of two halves), got {Fin}"
    F = Fin // 2
    C = w2.shape[1]
    H_pad = _round_up(H, 128)   # 200 -> 256
    C_pad = _round_up(C, 128)   # 3   -> 128

    cdt = jnp.dtype(compute_dtype)
    f32 = jnp.float32

    w1a = jnp.zeros((F, H_pad), cdt).at[:, :H].set(w1[:F].astype(cdt))
    w1b = jnp.zeros((F, H_pad), cdt).at[:, :H].set(w1[F:].astype(cdt))
    b1p = jnp.zeros((1, H_pad), f32).at[:, :H].set(jnp.reshape(b1, (1, H)).astype(f32))
    w2p = jnp.zeros((H_pad, C_pad), cdt).at[:H, :C].set(w2.astype(cdt))
    b2p = jnp.zeros((1, C_pad), f32).at[:, :C].set(jnp.reshape(b2, (1, C)).astype(f32))

    return {"w1a": w1a, "w1b": w1b, "b1": b1p, "w2": w2p, "b2": b2p,
            "F": F, "H": H, "C": C, "H_pad": H_pad, "C_pad": C_pad}


def _choose_batch_tile(B):
    """Batch tiling: one full-extent tile for small B; 512/1024-row tiles for
    large B (>=2 parallel grid steps so both v7x TensorCores are used)."""
    if B <= 512:
        return B, B                       # single tile, no batch padding
    TM = 1024 if B >= 4096 else 512
    return TM, _round_up(B, TM)


def prediction_forward(a, b, params, *, out_dtype=None):
    """a, b: [B, F] activations (any float dtype); params from
    prepare_prediction_params. Returns [B, num_classes] in `out_dtype`
    (defaults to a.dtype)."""
    B, F = a.shape
    assert b.shape == (B, F), f"a/b shape mismatch: {a.shape} vs {b.shape}"
    assert F == params["F"], f"expected per-input feature size {params['F']}, got {F}"

    H_pad, C_pad, C = params["H_pad"], params["C_pad"], params["C"]
    out_dtype = jnp.dtype(out_dtype) if out_dtype is not None else a.dtype

    TM, B_pad = _choose_batch_tile(B)
    a_in, b_in = a, b
    if B_pad != B:  # only when B > 512 and not a tile multiple
        a_in = jnp.zeros((B_pad, F), a.dtype).at[:B].set(a)
        b_in = jnp.zeros((B_pad, F), b.dtype).at[:B].set(b)

    grid = (B_pad // TM,)

    # Advisory cost estimate: tiny call; let XLA schedule it tightly.
    flops = 2 * (2 * B_pad * F * H_pad) + 2 * B_pad * H_pad * C_pad
    bytes_accessed = int(
        a_in.size * a_in.dtype.itemsize + b_in.size * b_in.dtype.itemsize
        + sum(int(params[k].size) * params[k].dtype.itemsize
              for k in ("w1a", "w1b", "b1", "w2", "b2"))
        + B_pad * C_pad * out_dtype.itemsize)
    cost = pl.CostEstimate(flops=int(flops),
                           transcendentals=int(B_pad * H_pad),
                           bytes_accessed=bytes_accessed)

    out_pad = pl.pallas_call(
        prediction_kernel,
        out_shape=jax.ShapeDtypeStruct((B_pad, C_pad), out_dtype),
        grid_spec=pltpu.PrefetchScalarGridSpec(
            num_scalar_prefetch=0,
            grid=grid,
            in_specs=[
                # batch-tiled activations at native F (full-extent last dim)
                pl.BlockSpec((TM, F), lambda i: (i, 0)),
                pl.BlockSpec((TM, F), lambda i: (i, 0)),
                # weights/biases: whole array, fetched once, VMEM-resident
                pl.BlockSpec((F, H_pad), lambda i: (0, 0)),
                pl.BlockSpec((F, H_pad), lambda i: (0, 0)),
                pl.BlockSpec((1, H_pad), lambda i: (0, 0)),
                pl.BlockSpec((H_pad, C_pad), lambda i: (0, 0)),
                pl.BlockSpec((1, C_pad), lambda i: (0, 0)),
            ],
            out_specs=pl.BlockSpec((TM, C_pad), lambda i: (i, 0)),
        ),
        compiler_params=pltpu.CompilerParams(
            dimension_semantics=("parallel",)),   # shards batch across TCs on v7x
        cost_estimate=cost,
    )(a_in, b_in, params["w1a"], params["w1b"], params["b1"],
      params["w2"], params["b2"])

    return out_pad[:B, :C]


if __name__ == "__main__":
    # Module config: inp_features=1 -> Linear1 input dim = 200 * 1 = 200,
    # so cat([a, b], -1) has 200 features -> a and b each carry 100 features.
    B = 8
    F = 100            # per-input feature size (cat -> 200)
    HIDDEN = 200
    NUM_CLASSES = 3    # args.num_classes

    key = jax.random.PRNGKey(0)
    k_a, k_b, k_w1, k_w2 = jax.random.split(key, 4)

    a = jax.random.normal(k_a, (B, F), dtype=jnp.float32)
    b = jax.random.normal(k_b, (B, F), dtype=jnp.float32)

    # Deterministic parameter init (matches RE2 Linear init scheme:
    # normal(std=sqrt(2/in)) for the activated layer, sqrt(1/in) otherwise,
    # zero bias); stored as [in, out].
    w1 = jax.random.normal(k_w1, (2 * F, HIDDEN), dtype=jnp.float32) * np.sqrt(2.0 / (2 * F))
    b1 = jnp.zeros((HIDDEN,), dtype=jnp.float32)
    w2 = jax.random.normal(k_w2, (HIDDEN, NUM_CLASSES), dtype=jnp.float32) * np.sqrt(1.0 / HIDDEN)
    b2 = jnp.zeros((NUM_CLASSES,), dtype=jnp.float32)

    # Pure-JAX reference for correctness.
    x_ref = jnp.concatenate([a, b], axis=-1)
    ref = _gelu_tanh(x_ref @ w1 + b1) @ w2 + b2

    # --- f32 compute path: exact parity with the reference ---
    params_f32 = prepare_prediction_params(w1, b1, w2, b2, compute_dtype=jnp.float32)
    out_f32 = jax.block_until_ready(prediction_forward(a, b, params_f32))
    assert out_f32.shape == (B, NUM_CLASSES)
    np.testing.assert_allclose(np.asarray(out_f32), np.asarray(ref),
                               rtol=1e-4, atol=1e-5)

    # --- bf16 MXU path (default param prep): fast path on v5e/v6e ---
    params_bf16 = prepare_prediction_params(w1, b1, w2, b2, compute_dtype=jnp.bfloat16)
    out_bf16 = jax.block_until_ready(prediction_forward(a, b, params_bf16))
    assert out_bf16.shape == (B, NUM_CLASSES)
    np.testing.assert_allclose(np.asarray(out_bf16, dtype=np.float32), np.asarray(ref),
                               rtol=2e-2, atol=8e-2)

    print("KERNEL_OK")
</pallas_src>

<mosaic_0001>
module attributes {stable_mosaic.version = 11 : i64} {
  func.func @prediction_kernel(%arg0: i32, %arg1: memref<8x100xf32, #tpu.memory_space<vmem>>, %arg2: memref<8x100xf32, #tpu.memory_space<vmem>>, %arg3: memref<100x256xf32, #tpu.memory_space<vmem>>, %arg4: memref<100x256xf32, #tpu.memory_space<vmem>>, %arg5: memref<1x256xf32, #tpu.memory_space<vmem>>, %arg6: memref<256x128xf32, #tpu.memory_space<vmem>>, %arg7: memref<1x128xf32, #tpu.memory_space<vmem>>, %arg8: memref<8x128xf32, #tpu.memory_space<vmem>>) attributes {dimension_semantics = [#tpu.dimension_semantics<parallel>], iteration_bounds = array<i64: 1>, scalar_prefetch = 0 : i64, scratch_operands = 0 : i64, tpu.core_type = #tpu.core_type<tc>, window_params = [{transform_indices = @transform_0, window_bounds = array<i64: 8, 100>}, {transform_indices = @transform_1, window_bounds = array<i64: 8, 100>}, {pipeline_mode = #tpu.pipeline_mode<synchronous>, transform_indices = @transform_2, window_bounds = array<i64: 100, 256>}, {pipeline_mode = #tpu.pipeline_mode<synchronous>, transform_indices = @transform_3, window_bounds = array<i64: 100, 256>}, {pipeline_mode = #tpu.pipeline_mode<synchronous>, transform_indices = @transform_4, window_bounds = array<i64: 1, 256>}, {pipeline_mode = #tpu.pipeline_mode<synchronous>, transform_indices = @transform_5, window_bounds = array<i64: 256, 128>}, {pipeline_mode = #tpu.pipeline_mode<synchronous>, transform_indices = @transform_6, window_bounds = array<i64: 1, 128>}, {transform_indices = @transform_7, window_bounds = array<i64: 8, 128>}]} {
    %c0 = arith.constant 0 : index
    %c0_0 = arith.constant 0 : index
    %0 = vector.load %arg1[%c0, %c0_0] : memref<8x100xf32, #tpu.memory_space<vmem>>, vector<8x100xf32>
    %c0_1 = arith.constant 0 : index
    %c0_2 = arith.constant 0 : index
    %1 = vector.load %arg3[%c0_1, %c0_2] : memref<100x256xf32, #tpu.memory_space<vmem>>, vector<100x256xf32>
    %cst = arith.constant dense<0.000000e+00> : vector<8x256xf32>
    %2 = tpu.matmul %0, %1, %cst {dimension_numbers = #tpu.dot_dimension_numbers<[1], [0], [0], [1], [0, 0, 1, 1], [], []>} : vector<8x100xf32>, vector<100x256xf32>, vector<8x256xf32> -> vector<8x256xf32>
    %c0_3 = arith.constant 0 : index
    %c0_4 = arith.constant 0 : index
    %3 = vector.load %arg2[%c0_3, %c0_4] : memref<8x100xf32, #tpu.memory_space<vmem>>, vector<8x100xf32>
    %c0_5 = arith.constant 0 : index
    %c0_6 = arith.constant 0 : index
    %4 = vector.load %arg4[%c0_5, %c0_6] : memref<100x256xf32, #tpu.memory_space<vmem>>, vector<100x256xf32>
    %cst_7 = arith.constant dense<0.000000e+00> : vector<8x256xf32>
    %5 = tpu.matmul %3, %4, %cst_7 {dimension_numbers = #tpu.dot_dimension_numbers<[1], [0], [0], [1], [0, 0, 1, 1], [], []>} : vector<8x100xf32>, vector<100x256xf32>, vector<8x256xf32> -> vector<8x256xf32>
    %6 = arith.addf %2, %5 : vector<8x256xf32>
    %c0_8 = arith.constant 0 : index
    %c0_9 = arith.constant 0 : index
    %7 = vector.load %arg5[%c0_8, %c0_9] : memref<1x256xf32, #tpu.memory_space<vmem>>, vector<1x256xf32>
    %8 = vector.broadcast %7 : vector<1x256xf32> to vector<8x256xf32>
    %9 = arith.addf %6, %8 : vector<8x256xf32>
    %cst_10 = arith.constant 5.000000e-01 : f32
    %10 = vector.broadcast %cst_10 : f32 to vector<8x256xf32>
    %11 = arith.mulf %10, %9 : vector<8x256xf32>
    %cst_11 = arith.constant 4.471500e-02 : f32
    %12 = vector.broadcast %cst_11 : f32 to vector<8x256xf32>
    %13 = arith.mulf %12, %9 : vector<8x256xf32>
    %14 = arith.mulf %13, %9 : vector<8x256xf32>
    %15 = arith.mulf %14, %9 : vector<8x256xf32>
    %16 = arith.addf %9, %15 : vector<8x256xf32>
    %cst_12 = arith.constant 0.797884583 : f32
    %17 = vector.broadcast %cst_12 : f32 to vector<8x256xf32>
    %18 = arith.mulf %17, %16 : vector<8x256xf32>
    %19 = math.tanh %18 : vector<8x256xf32>
    %cst_13 = arith.constant 1.000000e+00 : f32
    %20 = vector.broadcast %cst_13 : f32 to vector<8x256xf32>
    %21 = arith.addf %20, %19 : vector<8x256xf32>
    %22 = arith.mulf %11, %21 : vector<8x256xf32>
    %c0_14 = arith.constant 0 : index
    %c0_15 = arith.constant 0 : index
    %23 = vector.load %arg6[%c0_14, %c0_15] : memref<256x128xf32, #tpu.memory_space<vmem>>, vector<256x128xf32>
    %cst_16 = arith.constant dense<0.000000e+00> : vector<8x128xf32>
    %24 = tpu.matmul %22, %23, %cst_16 {dimension_numbers = #tpu.dot_dimension_numbers<[1], [0], [0], [1], [0, 0, 1, 1], [], []>} : vector<8x256xf32>, vector<256x128xf32>, vector<8x128xf32> -> vector<8x128xf32>
    %c0_17 = arith.constant 0 : index
    %c0_18 = arith.constant 0 : index
    %25 = vector.load %arg7[%c0_17, %c0_18] : memref<1x128xf32, #tpu.memory_space<vmem>>, vector<1x128xf32>
    %26 = vector.broadcast %25 : vector<1x128xf32> to vector<8x128xf32>
    %27 = arith.addf %24, %26 : vector<8x128xf32>
    %c0_19 = arith.constant 0 : index
    %c0_20 = arith.constant 0 : index
    %28 = vector.load %arg8[%c0_19, %c0_20] : memref<8x128xf32, #tpu.memory_space<vmem>>, vector<8x128xf32>
    tpu.vector_store %arg8[%c0_19, %c0_20], %27 {strides = array<i32>} : memref<8x128xf32, #tpu.memory_space<vmem>>, vector<8x128xf32>,
    return
  }
  func.func @transform_0(%arg0: i32) -> (i32, i32) {
    %c0_i32 = arith.constant 0 : i32
    %c0_i32_0 = arith.constant 0 : i32
    return %arg0, %c0_i32 : i32, i32
  }
  func.func @transform_1(%arg0: i32) -> (i32, i32) {
    %c0_i32 = arith.constant 0 : i32
    %c0_i32_0 = arith.constant 0 : i32
    return %arg0, %c0_i32 : i32, i32
  }
  func.func @transform_2(%arg0: i32) -> (i32, i32) {
    %c0_i32 = arith.constant 0 : i32
    %c0_i32_0 = arith.constant 0 : i32
    %c0_i32_1 = arith.constant 0 : i32
    return %c0_i32, %c0_i32_0 : i32, i32
  }
  func.func @transform_3(%arg0: i32) -> (i32, i32) {
    %c0_i32 = arith.constant 0 : i32
    %c0_i32_0 = arith.constant 0 : i32
    %c0_i32_1 = arith.constant 0 : i32
    return %c0_i32, %c0_i32_0 : i32, i32
  }
  func.func @transform_4(%arg0: i32) -> (i32, i32) {
    %c0_i32 = arith.constant 0 : i32
    %c0_i32_0 = arith.constant 0 : i32
    %c0_i32_1 = arith.constant 0 : i32
    return %c0_i32, %c0_i32_0 : i32, i32
  }
  func.func @transform_5(%arg0: i32) -> (i32, i32) {
    %c0_i32 = arith.constant 0 : i32
    %c0_i32_0 = arith.constant 0 : i32
    %c0_i32_1 = arith.constant 0 : i32
    return %c0_i32, %c0_i32_0 : i32, i32
  }
  func.func @transform_6(%arg0: i32) -> (i32, i32) {
    %c0_i32 = arith.constant 0 : i32
    %c0_i32_0 = arith.constant 0 : i32
    %c0_i32_1 = arith.constant 0 : i32
    return %c0_i32, %c0_i32_0 : i32, i32
  }
  func.func @transform_7(%arg0: i32) -> (i32, i32) {
    %c0_i32 = arith.constant 0 : i32
    %c0_i32_0 = arith.constant 0 : i32
    return %arg0, %c0_i32 : i32, i32
  }
}

</mosaic_0001>

<llo_original>
// kernel: tpu_custom_call.1
$region0: #{tpu_custom_call.1}
  #allocation0 [shape = 'u32[]', space=smem, size = 0x4, offset = 0x4, fixed_abs, tag = 'smem constant byte address 0x4 - core index']
  #allocation1 [shape = 'u32[72,128]{1,0:T(1,128)}', space=vmem, size = 0x9000, scoped, tag = 'internal scratch']
  %s0 = inlined_call_operand.hbm [shape: f32[8,100], index: 0, kind: input, shape index: {}]
  %s1 = inlined_call_operand.hbm [shape: f32[8,100], index: 1, kind: input, shape index: {}]
  %s2 = inlined_call_operand.hbm [shape: f32[100,256], index: 2, kind: input, shape index: {}]
  %s3 = inlined_call_operand.hbm [shape: f32[100,256], index: 3, kind: input, shape index: {}]
  %s4 = inlined_call_operand.vmem [shape: f32[1,256], index: 4, kind: input, shape index: {}]
  %s5 = inlined_call_operand.hbm [shape: f32[256,128], index: 5, kind: input, shape index: {}]
  %s6 = inlined_call_operand.vmem [shape: f32[1,128], index: 6, kind: input, shape index: {}]
  %s7 = inlined_call_operand.hbm [shape: f32[8,128], index: 7, kind: output, shape index: {}]
  %s8 = sld [smem:[#allocation0]]
  $region58: #{tpu_custom_call.1} parent=0
    _
  %s10 = ssub.s32 1, %s8
  %s11 = scalar_select 0, %s10, %s8
  $region1: #{tpu_custom_call.1} parent=0
    #allocation2 [shape = 'u8[4096]{0}', space=vmem, size = 0x1000, scoped, tag = 'input window, operand 0, single buffered']
    #allocation3 [shape = 's32[1]{0}', space=sflag, size = 0x4, scoped, tag = 'scoped memory for tpu_custom_call.1']
    #allocation4 [shape = 's32[1]{0}', space=sflag, size = 0x4, scoped, tag = 'scoped memory for tpu_custom_call.1']
    #allocation5 [shape = 'u8[4096]{0}', space=vmem, size = 0x1000, scoped, tag = 'input window, operand 1, single buffered']
    #allocation6 [shape = 's32[1]{0}', space=sflag, size = 0x4, scoped, tag = 'scoped memory for tpu_custom_call.1']
    #allocation7 [shape = 'u8[106496]{0}', space=vmem, size = 0x1a000, scoped, tag = 'input window, operand 2, single buffered']
    #allocation8 [shape = 'u8[106496]{0}', space=vmem, size = 0x1a000, scoped, tag = 'input window, operand 3, single buffered']
    #allocation9 [shape = 's32[1]{0}', space=sflag, size = 0x4, scoped, tag = 'scoped memory for tpu_custom_call.1']
    #allocation10 [shape = 'u8[131072]{0}', space=vmem, size = 0x20000, scoped, tag = 'input window, operand 5, single buffered']
    #allocation11 [shape = 'u8[4096]{0}', space=vmem, size = 0x1000, scoped, tag = 'output window, operand 0, single buffered']
    %12 = vsyncpa [#allocation3], 0
    %13 = vsyncpa [#allocation6], 0
    %14 = vsyncpa [#allocation9], 0
    %15 = vsyncpa [#allocation4], 0
    // Predicated region
    $region2: #{tpu_custom_call.1} parent=1 // pred_check
      _
    $region3: #{tpu_custom_call.1} parent=1 // pred_check_branch
      %17 = sbr.rel (0) target = $region5
    $region4: #{tpu_custom_call.1} parent=1 // pred_region
      %19 = vsyncadd [#allocation3], 0
      %s21 = sshll.u32 %s0, 4
      %s22 = int_to_ptr.hbm [resolvable:$true] %s21
      %s23 = sshll.u32 [#allocation2], 4
      %s24 = int_to_ptr.vmem [resolvable:$true] %s23
      %26 = dma.hbm_to_vmem [thread:$0]  %s22, 128, %s24, [#allocation3]
    $region5: #{tpu_custom_call.1} parent=1 // pred_fallthru
      _
    // Predicated region
    $region6: #{tpu_custom_call.1} parent=1 // pred_check
      _
    $region7: #{tpu_custom_call.1} parent=1 // pred_check_branch
      %28 = sbr.rel (0) target = $region9
    $region8: #{tpu_custom_call.1} parent=1 // pred_region
      %30 = vsyncadd [#allocation6], 0
      %s32 = sshll.u32 %s1, 4
      %s33 = int_to_ptr.hbm [resolvable:$true] %s32
      %s34 = sshll.u32 [#allocation5], 4
      %s35 = int_to_ptr.vmem [resolvable:$true] %s34
      %37 = dma.hbm_to_vmem [thread:$0]  %s33, 128, %s35, [#allocation6]
    $region9: #{tpu_custom_call.1} parent=1 // pred_fallthru
      _
    // Predicated region
    $region10: #{tpu_custom_call.1} parent=1 // pred_check
      _
    $region11: #{tpu_custom_call.1} parent=1 // pred_check_branch
      %39 = sbr.rel (0) target = $region13
    $region12: #{tpu_custom_call.1} parent=1 // pred_region
      %41 = vsyncadd [#allocation6], 0
      %s42 = sshll.u32 %s2, 4
      %s43 = int_to_ptr.hbm [resolvable:$true] %s42
      %s44 = sshll.u32 [#allocation7], 4
      %s45 = int_to_ptr.vmem [resolvable:$true] %s44
      %50 = dma.hbm_to_vmem [thread:$0]  %s43, 3328, %s45, [#allocation6], 256, 256, 16
    $region13: #{tpu_custom_call.1} parent=1 // pred_fallthru
      _
    // Predicated region
    $region14: #{tpu_custom_call.1} parent=1 // pred_check
      _
    $region15: #{tpu_custom_call.1} parent=1 // pred_check_branch
      %52 = sbr.rel (0) target = $region17
    $region16: #{tpu_custom_call.1} parent=1 // pred_region
      %54 = vsyncadd [#allocation9], 0
      %s55 = sshll.u32 %s3, 4
      %s56 = int_to_ptr.hbm [resolvable:$true] %s55
      %s57 = sshll.u32 [#allocation8], 4
      %s58 = int_to_ptr.vmem [resolvable:$true] %s57
      %63 = dma.hbm_to_vmem [thread:$0]  %s56, 3328, %s58, [#allocation9], 256, 256, 16
    $region17: #{tpu_custom_call.1} parent=1 // pred_fallthru
      _
    // Predicated region
    $region18: #{tpu_custom_call.1} parent=1 // pred_check
      _
    $region19: #{tpu_custom_call.1} parent=1 // pred_check_branch
      %65 = sbr.rel (0) target = $region21
    $region20: #{tpu_custom_call.1} parent=1 // pred_region
      _
    $region21: #{tpu_custom_call.1} parent=1 // pred_fallthru
      _
    // Predicated region
    $region22: #{tpu_custom_call.1} parent=1 // pred_check
      _
    $region23: #{tpu_custom_call.1} parent=1 // pred_check_branch
      %67 = sbr.rel (0) target = $region25
    $region24: #{tpu_custom_call.1} parent=1 // pred_region
      %69 = vsyncadd [#allocation9], 0
      %s70 = sshll.u32 %s5, 4
      %s71 = int_to_ptr.hbm [resolvable:$true] %s70
      %s72 = sshll.u32 [#allocation10], 4
      %s73 = int_to_ptr.vmem [resolvable:$true] %s72
      %78 = dma.hbm_to_vmem [thread:$0]  %s71, 4096, %s73, [#allocation9], 128, 128, 8
    $region25: #{tpu_custom_call.1} parent=1 // pred_fallthru
      _
    // Predicated region
    $region26: #{tpu_custom_call.1} parent=1 // pred_check
      _
    $region27: #{tpu_custom_call.1} parent=1 // pred_check_branch
      %80 = sbr.rel (0) target = $region29
    $region28: #{tpu_custom_call.1} parent=1 // pred_region
      _
    $region29: #{tpu_custom_call.1} parent=1 // pred_fallthru
      _
    // Predicated region
    $region30: #{tpu_custom_call.1} parent=1 // pred_check
      _
    $region31: #{tpu_custom_call.1} parent=1 // pred_check_branch
      %82 = sbr.rel (0) target = $region33
    $region32: #{tpu_custom_call.1} parent=1 // pred_region
      %84 = dma.done [#allocation3], 128
    $region33: #{tpu_custom_call.1} parent=1 // pred_fallthru
      _
    // Predicated region
    $region34: #{tpu_custom_call.1} parent=1 // pred_check
      _
    $region35: #{tpu_custom_call.1} parent=1 // pred_check_branch
      %86 = sbr.rel (0) target = $region37
    $region36: #{tpu_custom_call.1} parent=1 // pred_region
      %88 = dma.done [#allocation6], 128
    $region37: #{tpu_custom_call.1} parent=1 // pred_fallthru
      _
    // Predicated region
    $region38: #{tpu_custom_call.1} parent=1 // pred_check
      _
    $region39: #{tpu_custom_call.1} parent=1 // pred_check_branch
      %90 = sbr.rel (0) target = $region41
    $region40: #{tpu_custom_call.1} parent=1 // pred_region
      %92 = dma.done [#allocation6], 3328
    $region41: #{tpu_custom_call.1} parent=1 // pred_fallthru
      _
    // Predicated region
    $region42: #{tpu_custom_call.1} parent=1 // pred_check
      _
    $region43: #{tpu_custom_call.1} parent=1 // pred_check_branch
      %94 = sbr.rel (0) target = $region45
    $region44: #{tpu_custom_call.1} parent=1 // pred_region
      %96 = dma.done [#allocation9], 3328
    $region45: #{tpu_custom_call.1} parent=1 // pred_fallthru
      _
    // Predicated region
    $region46: #{tpu_custom_call.1} parent=1 // pred_check
      _
    $region47: #{tpu_custom_call.1} parent=1 // pred_check_branch
      %98 = sbr.rel (0) target = $region49
    $region48: #{tpu_custom_call.1} parent=1 // pred_region
      %100 = dma.done [#allocation9], 4096
    $region49: #{tpu_custom_call.1} parent=1 // pred_fallthru
      _
    %v101 = vld [vmem:[#allocation2] sm:$0xff]
    %v102 = vld [vmem:[#allocation7] sm:$0xff]
    %v103 = vld [vmem:[#allocation7 + $0x8] sm:$0xff]
    %v104 = vld [vmem:[#allocation7 + $0x10] sm:$0xff]
    %v105 = vld [vmem:[#allocation7 + $0x18] sm:$0xff]
    %v106 = vld [vmem:[#allocation7 + $0x20] sm:$0xff]
    %v107 = vld [vmem:[#allocation7 + $0x28] sm:$0xff]
    %v108 = vld [vmem:[#allocation7 + $0x30] sm:$0xff]
    %v109 = vld [vmem:[#allocation7 + $0x38] sm:$0xff]
    %v110 = vld [vmem:[#allocation7 + $0x40] sm:$0xff]
    %v111 = vld [vmem:[#allocation7 + $0x48] sm:$0xff]
    %v112 = vld [vmem:[#allocation7 + $0x50] sm:$0xff]
    %v113 = vld [vmem:[#allocation7 + $0x58] sm:$0xff]
    %v114 = vld [vmem:[#allocation7 + $0x60] sm:$0xff]
    %v115 = vld [vmem:[#allocation7 + $0x68] sm:$0xff]
    %v116 = vld [vmem:[#allocation7 + $0x70] sm:$0xff]
    %v117 = vld [vmem:[#allocation7 + $0x78] sm:$0xff]
    %v118 = vld [vmem:[#allocation7 + $0x80] sm:$0xff]
    %v119 = vld [vmem:[#allocation7 + $0x88] sm:$0xff]
    %v120 = vld [vmem:[#allocation7 + $0x90] sm:$0xff]
    %v121 = vld [vmem:[#allocation7 + $0x98] sm:$0xff]
    %v122 = vld [vmem:[#allocation7 + $0xa0] sm:$0xff]
    %v123 = vld [vmem:[#allocation7 + $0xa8] sm:$0xff]
    %v124 = vld [vmem:[#allocation7 + $0xb0] sm:$0xff]
    %v125 = vld [vmem:[#allocation7 + $0xb8] sm:$0xff]
    %v126 = vld [vmem:[#allocation7 + $0xc0] sm:$0xf]
    %v127 = vld [vmem:[#allocation7 + $0xc8] sm:$0xf]
    %v128 = vld [vmem:[#allocation5] sm:$0xff]
    %v129 = vld [vmem:[#allocation8] sm:$0xff]
    %v130 = vld [vmem:[#allocation8 + $0x8] sm:$0xff]
    %v131 = vld [vmem:[#allocation8 + $0x10] sm:$0xff]
    %v132 = vld [vmem:[#allocation8 + $0x18] sm:$0xff]
    %v133 = vld [vmem:[#allocation8 + $0x20] sm:$0xff]
    %v134 = vld [vmem:[#allocation8 + $0x28] sm:$0xff]
    %v135 = vld [vmem:[#allocation8 + $0x30] sm:$0xff]
    %v136 = vld [vmem:[#allocation8 + $0x38] sm:$0xff]
    %v137 = vld [vmem:[#allocation8 + $0x40] sm:$0xff]
    %v138 = vld [vmem:[#allocation8 + $0x48] sm:$0xff]
    %v139 = vld [vmem:[#allocation8 + $0x50] sm:$0xff]
    %v140 = vld [vmem:[#allocation8 + $0x58] sm:$0xff]
    %v141 = vld [vmem:[#allocation8 + $0x60] sm:$0xff]
    %v142 = vld [vmem:[#allocation8 + $0x68] sm:$0xff]
    %v143 = vld [vmem:[#allocation8 + $0x70] sm:$0xff]
    %v144 = vld [vmem:[#allocation8 + $0x78] sm:$0xff]
    %v145 = vld [vmem:[#allocation8 + $0x80] sm:$0xff]
    %v146 = vld [vmem:[#allocation8 + $0x88] sm:$0xff]
    %v147 = vld [vmem:[#allocation8 + $0x90] sm:$0xff]
    %v148 = vld [vmem:[#allocation8 + $0x98] sm:$0xff]
    %v149 = vld [vmem:[#allocation8 + $0xa0] sm:$0xff]
    %v150 = vld [vmem:[#allocation8 + $0xa8] sm:$0xff]
    %v151 = vld [vmem:[#allocation8 + $0xb0] sm:$0xff]
    %v152 = vld [vmem:[#allocation8 + $0xb8] sm:$0xff]
    %v153 = vld [vmem:[#allocation8 + $0xc0] sm:$0xf]
    %v154 = vld [vmem:[#allocation8 + $0xc8] sm:$0xf]
    %vm155 = vcmask 818176
    %v157 = vsel %vm155, %v128, 0
    %vm159 = vcmask 1043456
    %v161 = vsel %vm159, %v153, 0
    %v164 = vsel %vm159, %v154, 0
    %166 = vmatpush.msra.mxu0 0.0
    %167 = vmatpush.msra.mxu0 0.0
    %168 = vmatpush.msra.mxu0 0.0
    %169 = vmatpush.msra.mxu0 %v161
    %170 = vmatpush.msra.mxu0 %v151
    %171 = vmatpush.msra.mxu0 %v149
    %172 = vmatpush.msra.mxu0 %v147
    %173 = vmatpush.msra.mxu0 %v145
    %174 = vmatpush.msra.mxu0 %v143
    %175 = vmatpush.msra.mxu0 %v141
    %176 = vmatpush.msra.mxu0 %v139
    %177 = vmatpush.msra.mxu0 %v137
    %178 = vmatpush.msra.mxu0 %v135
    %179 = vmatpush.msra.mxu0 %v133
    %180 = vmatpush.msra.mxu0 %v131
    %181 = vmatpush.msra.mxu0 %v129
    %182 = vmatmul.f32.gmra.mxu0 %v157
    %v183 = vpop.f32.mrf.mxu0
    %v184 = vadd.f32 0.0, %v183
    %185 = vdwg.mxu0
    %186 = vmatpush.msra.mxu0 0.0
    %187 = vmatpush.msra.mxu0 0.0
    %188 = vmatpush.msra.mxu0 0.0
    %189 = vmatpush.msra.mxu0 %v164
    %190 = vmatpush.msra.mxu0 %v152
    %191 = vmatpush.msra.mxu0 %v150
    %192 = vmatpush.msra.mxu0 %v148
    %193 = vmatpush.msra.mxu0 %v146
    %194 = vmatpush.msra.mxu0 %v144
    %195 = vmatpush.msra.mxu0 %v142
    %196 = vmatpush.msra.mxu0 %v140
    %197 = vmatpush.msra.mxu0 %v138
    %198 = vmatpush.msra.mxu0 %v136
    %199 = vmatpush.msra.mxu0 %v134
    %200 = vmatpush.msra.mxu0 %v132
    %201 = vmatpush.msra.mxu0 %v130
    %202 = vmatmul.f32.gmra.mxu0 %v157
    %v203 = vpop.f32.mrf.mxu0
    %v204 = vadd.f32 0.0, %v203
    %205 = vdwg.mxu0
    %v207 = vsel %vm155, %v101, 0
    %v210 = vsel %vm159, %v126, 0
    %v213 = vsel %vm159, %v127, 0
    %215 = vmatpush.msra.mxu0 0.0
    %216 = vmatpush.msra.mxu0 0.0
    %217 = vmatpush.msra.mxu0 0.0
    %218 = vmatpush.msra.mxu0 %v210
    %219 = vmatpush.msra.mxu0 %v124
    %220 = vmatpush.msra.mxu0 %v122
    %221 = vmatpush.msra.mxu0 %v120
    %222 = vmatpush.msra.mxu0 %v118
    %223 = vmatpush.msra.mxu0 %v116
    %224 = vmatpush.msra.mxu0 %v114
    %225 = vmatpush.msra.mxu0 %v112
    %226 = vmatpush.msra.mxu0 %v110
    %227 = vmatpush.msra.mxu0 %v108
    %228 = vmatpush.msra.mxu0 %v106
    %229 = vmatpush.msra.mxu0 %v104
    %230 = vmatpush.msra.mxu0 %v102
    %231 = vmatmul.f32.gmra.mxu0 %v207
    %v232 = vpop.f32.mrf.mxu0
    %v233 = vadd.f32 %v184, %v232
    %234 = vdwg.mxu0
    %235 = vmatpush.msra.mxu0 0.0
    %236 = vmatpush.msra.mxu0 0.0
    %237 = vmatpush.msra.mxu0 0.0
    %238 = vmatpush.msra.mxu0 %v213
    %239 = vmatpush.msra.mxu0 %v125
    %240 = vmatpush.msra.mxu0 %v123
    %241 = vmatpush.msra.mxu0 %v121
    %242 = vmatpush.msra.mxu0 %v119
    %243 = vmatpush.msra.mxu0 %v117
    %244 = vmatpush.msra.mxu0 %v115
    %245 = vmatpush.msra.mxu0 %v113
    %246 = vmatpush.msra.mxu0 %v111
    %247 = vmatpush.msra.mxu0 %v109
    %248 = vmatpush.msra.mxu0 %v107
    %249 = vmatpush.msra.mxu0 %v105
    %250 = vmatpush.msra.mxu0 %v103
    %251 = vmatmul.f32.gmra.mxu0 %v207
    %v252 = vpop.f32.mrf.mxu0
    %v253 = vadd.f32 %v204, %v252
    %254 = vdwg.mxu0
    %v255 = vld [vmem:[%s4] sm:$0x3]
    %v257 = vperm.slane %v255, 0
    %v258 = vperm.slane %v255, 1
    %v261 = vadd.f32 %v233, %v257
    %v262 = vadd.f32 %v253, %v258
    %v263 = vmul.f32 %v261, 0.5
    %v264 = vmul.f32 %v262, 0.5
    %v265 = vmul.f32 %v261, 0.044715
    %v266 = vmul.f32 %v262, 0.044715
    %v267 = vmul.f32 %v265, %v261
    %v268 = vmul.f32 %v266, %v262
    %v269 = vmul.f32 %v267, %v261
    %v270 = vmul.f32 %v268, %v262
    %v271 = vadd.f32 %v261, %v269
    %v272 = vadd.f32 %v262, %v270
    %v273 = vmul.f32 %v271, 0.7978846
    %v274 = vmul.f32 %v272, 0.7978846
    %v275 = vtanh.pop %v273
    %v276 = vtanh.pop %v274
    %v277 = vadd.f32 %v275, 1.0
    %v278 = vadd.f32 %v276, 1.0
    %v279 = vmul.f32 %v263, %v277
    %v280 = vmul.f32 %v264, %v278
    %v281 = vld [vmem:[#allocation10] sm:$0xff]
    %v282 = vld [vmem:[#allocation10 + $0x8] sm:$0xff]
    %v283 = vld [vmem:[#allocation10 + $0x10] sm:$0xff]
    %v284 = vld [vmem:[#allocation10 + $0x18] sm:$0xff]
    %v285 = vld [vmem:[#allocation10 + $0x20] sm:$0xff]
    %v286 = vld [vmem:[#allocation10 + $0x28] sm:$0xff]
    %v287 = vld [vmem:[#allocation10 + $0x30] sm:$0xff]
    %v288 = vld [vmem:[#allocation10 + $0x38] sm:$0xff]
    %v289 = vld [vmem:[#allocation10 + $0x40] sm:$0xff]
    %v290 = vld [vmem:[#allocation10 + $0x48] sm:$0xff]
    %v291 = vld [vmem:[#allocation10 + $0x50] sm:$0xff]
    %v292 = vld [vmem:[#allocation10 + $0x58] sm:$0xff]
    %v293 = vld [vmem:[#allocation10 + $0x60] sm:$0xff]
    %v294 = vld [vmem:[#allocation10 + $0x68] sm:$0xff]
    %v295 = vld [vmem:[#allocation10 + $0x70] sm:$0xff]
    %v296 = vld [vmem:[#allocation10 + $0x78] sm:$0xff]
    %v297 = vld [vmem:[#allocation10 + $0x80] sm:$0xff]
    %v298 = vld [vmem:[#allocation10 + $0x88] sm:$0xff]
    %v299 = vld [vmem:[#allocation10 + $0x90] sm:$0xff]
    %v300 = vld [vmem:[#allocation10 + $0x98] sm:$0xff]
    %v301 = vld [vmem:[#allocation10 + $0xa0] sm:$0xff]
    %v302 = vld [vmem:[#allocation10 + $0xa8] sm:$0xff]
    %v303 = vld [vmem:[#allocation10 + $0xb0] sm:$0xff]
    %v304 = vld [vmem:[#allocation10 + $0xb8] sm:$0xff]
    %v305 = vld [vmem:[#allocation10 + $0xc0] sm:$0xff]
    %v306 = vld [vmem:[#allocation10 + $0xc8] sm:$0xff]
    %v307 = vld [vmem:[#allocation10 + $0xd0] sm:$0xff]
    %v308 = vld [vmem:[#allocation10 + $0xd8] sm:$0xff]
    %v309 = vld [vmem:[#allocation10 + $0xe0] sm:$0xff]
    %v310 = vld [vmem:[#allocation10 + $0xe8] sm:$0xff]
    %v311 = vld [vmem:[#allocation10 + $0xf0] sm:$0xff]
    %v312 = vld [vmem:[#allocation10 + $0xf8] sm:$0xff]
    %v313 = vld [vmem:[%s6] sm:$0x1]
    %v315 = vperm.slane %v313, 0
    %317 = vmatpush.msra.mxu0 %v296
    %318 = vmatpush.msra.mxu0 %v295
    %319 = vmatpush.msra.mxu0 %v294
    %320 = vmatpush.msra.mxu0 %v293
    %321 = vmatpush.msra.mxu0 %v292
    %322 = vmatpush.msra.mxu0 %v291
    %323 = vmatpush.msra.mxu0 %v290
    %324 = vmatpush.msra.mxu0 %v289
    %325 = vmatpush.msra.mxu0 %v288
    %326 = vmatpush.msra.mxu0 %v287
    %327 = vmatpush.msra.mxu0 %v286
    %328 = vmatpush.msra.mxu0 %v285
    %329 = vmatpush.msra.mxu0 %v284
    %330 = vmatpush.msra.mxu0 %v283
    %331 = vmatpush.msra.mxu0 %v282
    %332 = vmatpush.msra.mxu0 %v281
    %333 = vmatmul.f32.gmra.mxu0 %v279
    %v334 = vpop.f32.mrf.mxu0
    %v335 = vadd.f32 %v315, %v334
    %336 = vdwg.mxu0
    %337 = vmatpush.msra.mxu0 %v312
    %338 = vmatpush.msra.mxu0 %v311
    %339 = vmatpush.msra.mxu0 %v310
    %340 = vmatpush.msra.mxu0 %v309
    %341 = vmatpush.msra.mxu0 %v308
    %342 = vmatpush.msra.mxu0 %v307
    %343 = vmatpush.msra.mxu0 %v306
    %344 = vmatpush.msra.mxu0 %v305
    %345 = vmatpush.msra.mxu0 %v304
    %346 = vmatpush.msra.mxu0 %v303
    %347 = vmatpush.msra.mxu0 %v302
    %348 = vmatpush.msra.mxu0 %v301
    %349 = vmatpush.msra.mxu0 %v300
    %350 = vmatpush.msra.mxu0 %v299
    %351 = vmatpush.msra.mxu0 %v298
    %352 = vmatpush.msra.mxu0 %v297
    %353 = vmatmul.f32.gmra.mxu0 %v280
    %v354 = vpop.f32.mrf.mxu0
    %v355 = vadd.f32 %v335, %v354
    %356 = vdwg.mxu0
    %357 = vst [vmem:[#allocation11] sm:$0xff] %v355
    // Predicated region
    $region50: #{tpu_custom_call.1} parent=1 // pred_check
      _
    $region51: #{tpu_custom_call.1} parent=1 // pred_check_branch
      %359 = sbr.rel (0) target = $region53
    $region52: #{tpu_custom_call.1} parent=1 // pred_region
      %361 = vsyncadd [#allocation4], 0
      %s363 = sshll.u32 [#allocation11], 4
      %s364 = int_to_ptr.vmem [resolvable:$true] %s363
      %s365 = sshll.u32 %s7, 4
      %s366 = int_to_ptr.hbm [resolvable:$true] %s365
      %368 = dma.vmem_to_hbm [thread:$0]  %s364, 128, %s366, [#allocation4]
    $region53: #{tpu_custom_call.1} parent=1 // pred_fallthru
      _
    // Predicated region
    $region54: #{tpu_custom_call.1} parent=1 // pred_check
      _
    $region55: #{tpu_custom_call.1} parent=1 // pred_check_branch
      %370 = sbr.rel (0) target = $region57
    $region56: #{tpu_custom_call.1} parent=1 // pred_region
      %372 = dma.done [#allocation4], 128
    $region57: #{tpu_custom_call.1} parent=1 // pred_fallthru
      _
    %373 = vsyncpa [#allocation3], 1
    %374 = vsyncpa [#allocation6], 1
    %375 = vsyncpa [#allocation9], 1
    %376 = vsyncpa [#allocation4], 1

</llo_original>
